<compile_context>
chip_gen: v7x
topology: tpu7x:2x2x1
jax: 0.10.0
libtpu: 0.0.40
codegen_flags: <defaults>
</compile_context>

<pallas_src>
import jax
import jax.numpy as jnp
from jax.experimental import pallas as pl
from jax.experimental.pallas import tpu as pltpu


def graph_lstm_kernel(x_ref, wfeat_ref, hid_ref, cell_ref, out_ref):
    """Fused LSTM-gate update for one batch element, NCHW layout.

    x_ref:     (1, n_feat, P)       input features (P = N*N on the lane axis)
    wfeat_ref: (4, c_out, n_feat)   feat-half gate weights, gates = [f, i, o, c]
    hid_ref:   (4, c_out, P)        precomputed h_hid-half @ W + bias (batch-invariant)
    cell_ref:  (c_out, P)           previous cell state (batch-invariant)
    out_ref:   (1, c_out, P)        new hidden state (NCHW, flattened spatial)
    """
    n_feat = x_ref.shape[1]
    feat = x_ref[0]                              # (n_feat, P), lane-dense

    def gate_pre(g):
        # Batch-invariant hidden-half + bias is already in hid_ref; add the
        # feat-half with n_feat VPU broadcast-FMAs (no MXU for tiny C).
        acc = hid_ref[g]                         # (c_out, P)
        wg = wfeat_ref[g]                        # (c_out, n_feat)
        for k in range(n_feat):                  # static unroll, n_feat is tiny
            acc = acc + wg[:, k:k + 1] * feat[k:k + 1, :]
        return acc

    f_g = jax.nn.sigmoid(gate_pre(0))
    i_g = jax.nn.sigmoid(gate_pre(1))
    o_g = jax.nn.sigmoid(gate_pre(2))
    c_t = jnp.tanh(gate_pre(3))

    cell_new = f_g * cell_ref[...] + i_g * c_t
    out_ref[0] = (o_g * jnp.tanh(cell_new)).astype(out_ref.dtype)


def graph_lstm_forward(graph, h_hid, cell, params):
    """graph: (B, C, N, N) NCHW.  h_hid/cell: (1, N, N, C) NHWC.  Returns (B, c_out, N, N)."""
    wf, wi, wo, wc, bf, bi, bo, bc = params
    B, C, N, N2 = graph.shape
    assert N == N2
    c_out = wf.shape[1]
    P = N * N

    # NCHW -> (B, C, P): pure reshape, no transpose / no HBM shuffle.
    x = graph.reshape(B, C, P)

    # --- tiny batch-invariant precompute (done once, outside the grid) ---------
    # Gate preact = feat @ W[C:] + (h_hid @ W[:C] + b); the parenthesized term is
    # identical for every batch element, so hoist it.
    h_flat = h_hid.reshape(P, C)                               # (P, C)

    def hid_term(w, b):                                        # (c_out, P)
        return (h_flat @ w[:C] + b).T

    hid = jnp.stack([hid_term(wf, bf), hid_term(wi, bi),
                     hid_term(wo, bo), hid_term(wc, bc)], axis=0)      # (4, c_out, P)
    wfeat = jnp.stack([wf[C:].T, wi[C:].T, wo[C:].T, wc[C:].T], axis=0)  # (4, c_out, C)
    cell_t = cell.reshape(P, c_out).T                                   # (c_out, P)

    const = lambda b: (0, 0, 0)

    out = pl.pallas_call(
        graph_lstm_kernel,
        out_shape=jax.ShapeDtypeStruct((B, c_out, P), jnp.float32),
        grid_spec=pltpu.PrefetchScalarGridSpec(
            num_scalar_prefetch=0,
            grid=(B,),
            in_specs=[
                pl.BlockSpec((1, C, P), lambda b: (b, 0, 0)),        # per-batch input slab
                pl.BlockSpec((4, c_out, C), const),                  # fused gate weights (resident)
                pl.BlockSpec((4, c_out, P), const),                  # hoisted hid-half + bias (resident)
                pl.BlockSpec((c_out, P), lambda b: (0, 0)),          # cell state (resident, no B-broadcast)
            ],
            out_specs=pl.BlockSpec((1, c_out, P), lambda b: (b, 0, 0)),
        ),
        compiler_params=pltpu.CompilerParams(dimension_semantics=("parallel",)),
    )(x, wfeat, hid, cell_t)

    # (B, c_out, P) is already NCHW; just un-flatten the spatial axis.
    return out.reshape(B, c_out, N, N)


def _reference(graph, h_hid, cell, params):
    """Pure-JAX reference mirroring the PyTorch forward (eval mode)."""
    wf, wi, wo, wc, bf, bi, bo, bc = params
    B, C, N, _ = graph.shape
    feat = jnp.transpose(graph, (0, 2, 3, 1))
    h_rep = jnp.broadcast_to(h_hid, (B, N, N, h_hid.shape[-1]))
    c_rep = jnp.broadcast_to(cell, (B, N, N, cell.shape[-1]))
    ht = jnp.concatenate([h_rep, feat], axis=-1)
    f = jax.nn.sigmoid(ht @ wf + bf[0])
    i = jax.nn.sigmoid(ht @ wi + bi[0])
    o = jax.nn.sigmoid(ht @ wo + bo[0])
    c_tilde = jnp.tanh(ht @ wc + bc[0])
    cell_new = f * c_rep + i * c_tilde
    h_new = o * jnp.tanh(cell_new)
    return jnp.transpose(h_new, (0, 3, 1, 2))


if __name__ == "__main__":
    # Small, module-consistent shapes. The broadcast `f * cell` in the original
    # module requires n_GMB == n_feat, so we pick them equal.
    B, n_feat, N = 2, 4, 16
    n_GMB = n_feat
    c_in = 2 * n_feat

    key = jax.random.PRNGKey(0)
    keys = jax.random.split(key, 10)
    bound = 1.0 / jnp.sqrt(jnp.float32(c_in))  # PyTorch Linear default init range

    def u(k, shape):
        return jax.random.uniform(k, shape, jnp.float32, -bound, bound)

    # Weights stored as (c_in, c_out) so y = x @ W + b (Linear with W pre-transposed).
    wf, wi, wo, wc = (u(keys[j], (c_in, n_GMB)) for j in range(4))
    bf, bi, bo, bc = (u(keys[4 + j], (1, n_GMB)) for j in range(4))
    params = (wf, wi, wo, wc, bf, bi, bo, bc)

    # init_graph: (n_feat, N, N) -> h_hid/cell: (1, N, N, n_feat)
    init_graph = jax.random.normal(keys[8], (n_feat, N, N), jnp.float32)
    h_hid = jnp.transpose(init_graph[None], (0, 2, 3, 1))
    cell = h_hid

    # input graph: (B, n_feat, N, N) NCHW
    graph = jax.random.normal(keys[9], (B, n_feat, N, N), jnp.float32)

    h = graph_lstm_forward(graph, h_hid, cell, params)
    h = jax.block_until_ready(h)

    h_ref = _reference(graph, h_hid, cell, params)
    assert h.shape == (B, n_GMB, N, N)
    assert jnp.allclose(h, h_ref, atol=1e-5, rtol=1e-5), "mismatch vs reference"

    print("KERNEL_OK")
</pallas_src>

<mosaic_0001>
module attributes {stable_mosaic.version = 11 : i64} {
  func.func @graph_lstm_kernel(%arg0: i32, %arg1: memref<1x4x256xf32, #tpu.memory_space<vmem>>, %arg2: memref<4x4x4xf32, #tpu.memory_space<vmem>>, %arg3: memref<4x4x256xf32, #tpu.memory_space<vmem>>, %arg4: memref<4x256xf32, #tpu.memory_space<vmem>>, %arg5: memref<1x4x256xf32, #tpu.memory_space<vmem>>) attributes {dimension_semantics = [#tpu.dimension_semantics<parallel>], iteration_bounds = array<i64: 2>, scalar_prefetch = 0 : i64, scratch_operands = 0 : i64, tpu.core_type = #tpu.core_type<tc>, window_params = [{transform_indices = @transform_0, window_bounds = array<i64: 1, 4, 256>}, {pipeline_mode = #tpu.pipeline_mode<synchronous>, transform_indices = @transform_1, window_bounds = array<i64: 4, 4, 4>}, {pipeline_mode = #tpu.pipeline_mode<synchronous>, transform_indices = @transform_2, window_bounds = array<i64: 4, 4, 256>}, {pipeline_mode = #tpu.pipeline_mode<synchronous>, transform_indices = @transform_3, window_bounds = array<i64: 4, 256>}, {transform_indices = @transform_4, window_bounds = array<i64: 1, 4, 256>}]} {
    %c0 = arith.constant 0 : index
    %c0_0 = arith.constant 0 : index
    %c0_1 = arith.constant 0 : index
    %0 = vector.load %arg1[%c0, %c0_0, %c0_1] : memref<1x4x256xf32, #tpu.memory_space<vmem>>, vector<1x4x256xf32>
    %1 = vector.shape_cast %0 : vector<1x4x256xf32> to vector<4x256xf32>
    %c0_2 = arith.constant 0 : index
    %c0_3 = arith.constant 0 : index
    %c0_4 = arith.constant 0 : index
    %2 = vector.load %arg3[%c0_2, %c0_3, %c0_4] : memref<4x4x256xf32, #tpu.memory_space<vmem>>, vector<1x4x256xf32>
    %3 = vector.shape_cast %2 : vector<1x4x256xf32> to vector<4x256xf32>
    %c0_5 = arith.constant 0 : index
    %c0_6 = arith.constant 0 : index
    %c0_7 = arith.constant 0 : index
    %4 = vector.load %arg2[%c0_5, %c0_6, %c0_7] : memref<4x4x4xf32, #tpu.memory_space<vmem>>, vector<1x4x4xf32>
    %5 = vector.shape_cast %4 : vector<1x4x4xf32> to vector<4x4xf32>
    %6 = vector.extract_strided_slice %5 {offsets = [0, 0], sizes = [4, 1], strides = [1, 1]} : vector<4x4xf32> to vector<4x1xf32>
    %7 = vector.extract_strided_slice %1 {offsets = [0, 0], sizes = [1, 256], strides = [1, 1]} : vector<4x256xf32> to vector<1x256xf32>
    %8 = vector.broadcast %6 : vector<4x1xf32> to vector<4x256xf32>
    %9 = vector.broadcast %7 : vector<1x256xf32> to vector<4x256xf32>
    %10 = arith.mulf %8, %9 : vector<4x256xf32>
    %11 = arith.addf %3, %10 : vector<4x256xf32>
    %12 = vector.extract_strided_slice %5 {offsets = [0, 1], sizes = [4, 1], strides = [1, 1]} : vector<4x4xf32> to vector<4x1xf32>
    %13 = vector.extract_strided_slice %1 {offsets = [1, 0], sizes = [1, 256], strides = [1, 1]} : vector<4x256xf32> to vector<1x256xf32>
    %14 = vector.broadcast %12 : vector<4x1xf32> to vector<4x256xf32>
    %15 = vector.broadcast %13 : vector<1x256xf32> to vector<4x256xf32>
    %16 = arith.mulf %14, %15 : vector<4x256xf32>
    %17 = arith.addf %11, %16 : vector<4x256xf32>
    %18 = vector.extract_strided_slice %5 {offsets = [0, 2], sizes = [4, 1], strides = [1, 1]} : vector<4x4xf32> to vector<4x1xf32>
    %19 = vector.extract_strided_slice %1 {offsets = [2, 0], sizes = [1, 256], strides = [1, 1]} : vector<4x256xf32> to vector<1x256xf32>
    %20 = vector.broadcast %18 : vector<4x1xf32> to vector<4x256xf32>
    %21 = vector.broadcast %19 : vector<1x256xf32> to vector<4x256xf32>
    %22 = arith.mulf %20, %21 : vector<4x256xf32>
    %23 = arith.addf %17, %22 : vector<4x256xf32>
    %24 = vector.extract_strided_slice %5 {offsets = [0, 3], sizes = [4, 1], strides = [1, 1]} : vector<4x4xf32> to vector<4x1xf32>
    %25 = vector.extract_strided_slice %1 {offsets = [3, 0], sizes = [1, 256], strides = [1, 1]} : vector<4x256xf32> to vector<1x256xf32>
    %26 = vector.broadcast %24 : vector<4x1xf32> to vector<4x256xf32>
    %27 = vector.broadcast %25 : vector<1x256xf32> to vector<4x256xf32>
    %28 = arith.mulf %26, %27 : vector<4x256xf32>
    %29 = arith.addf %23, %28 : vector<4x256xf32>
    %30 = arith.negf %29 : vector<4x256xf32>
    %31 = math.exp %30 : vector<4x256xf32>
    %cst = arith.constant 1.000000e+00 : f32
    %32 = vector.broadcast %cst : f32 to vector<4x256xf32>
    %33 = arith.addf %32, %31 : vector<4x256xf32>
    %34 = arith.divf %32, %33 : vector<4x256xf32>
    %c1 = arith.constant 1 : index
    %c0_8 = arith.constant 0 : index
    %c0_9 = arith.constant 0 : index
    %35 = vector.load %arg3[%c1, %c0_8, %c0_9] : memref<4x4x256xf32, #tpu.memory_space<vmem>>, vector<1x4x256xf32>
    %36 = vector.shape_cast %35 : vector<1x4x256xf32> to vector<4x256xf32>
    %c1_10 = arith.constant 1 : index
    %c0_11 = arith.constant 0 : index
    %c0_12 = arith.constant 0 : index
    %37 = vector.load %arg2[%c1_10, %c0_11, %c0_12] : memref<4x4x4xf32, #tpu.memory_space<vmem>>, vector<1x4x4xf32>
    %38 = vector.shape_cast %37 : vector<1x4x4xf32> to vector<4x4xf32>
    %39 = vector.extract_strided_slice %38 {offsets = [0, 0], sizes = [4, 1], strides = [1, 1]} : vector<4x4xf32> to vector<4x1xf32>
    %40 = vector.extract_strided_slice %1 {offsets = [0, 0], sizes = [1, 256], strides = [1, 1]} : vector<4x256xf32> to vector<1x256xf32>
    %41 = vector.broadcast %39 : vector<4x1xf32> to vector<4x256xf32>
    %42 = vector.broadcast %40 : vector<1x256xf32> to vector<4x256xf32>
    %43 = arith.mulf %41, %42 : vector<4x256xf32>
    %44 = arith.addf %36, %43 : vector<4x256xf32>
    %45 = vector.extract_strided_slice %38 {offsets = [0, 1], sizes = [4, 1], strides = [1, 1]} : vector<4x4xf32> to vector<4x1xf32>
    %46 = vector.extract_strided_slice %1 {offsets = [1, 0], sizes = [1, 256], strides = [1, 1]} : vector<4x256xf32> to vector<1x256xf32>
    %47 = vector.broadcast %45 : vector<4x1xf32> to vector<4x256xf32>
    %48 = vector.broadcast %46 : vector<1x256xf32> to vector<4x256xf32>
    %49 = arith.mulf %47, %48 : vector<4x256xf32>
    %50 = arith.addf %44, %49 : vector<4x256xf32>
    %51 = vector.extract_strided_slice %38 {offsets = [0, 2], sizes = [4, 1], strides = [1, 1]} : vector<4x4xf32> to vector<4x1xf32>
    %52 = vector.extract_strided_slice %1 {offsets = [2, 0], sizes = [1, 256], strides = [1, 1]} : vector<4x256xf32> to vector<1x256xf32>
    %53 = vector.broadcast %51 : vector<4x1xf32> to vector<4x256xf32>
    %54 = vector.broadcast %52 : vector<1x256xf32> to vector<4x256xf32>
    %55 = arith.mulf %53, %54 : vector<4x256xf32>
    %56 = arith.addf %50, %55 : vector<4x256xf32>
    %57 = vector.extract_strided_slice %38 {offsets = [0, 3], sizes = [4, 1], strides = [1, 1]} : vector<4x4xf32> to vector<4x1xf32>
    %58 = vector.extract_strided_slice %1 {offsets = [3, 0], sizes = [1, 256], strides = [1, 1]} : vector<4x256xf32> to vector<1x256xf32>
    %59 = vector.broadcast %57 : vector<4x1xf32> to vector<4x256xf32>
    %60 = vector.broadcast %58 : vector<1x256xf32> to vector<4x256xf32>
    %61 = arith.mulf %59, %60 : vector<4x256xf32>
    %62 = arith.addf %56, %61 : vector<4x256xf32>
    %63 = arith.negf %62 : vector<4x256xf32>
    %64 = math.exp %63 : vector<4x256xf32>
    %cst_13 = arith.constant 1.000000e+00 : f32
    %65 = vector.broadcast %cst_13 : f32 to vector<4x256xf32>
    %66 = arith.addf %65, %64 : vector<4x256xf32>
    %67 = arith.divf %65, %66 : vector<4x256xf32>
    %c2 = arith.constant 2 : index
    %c0_14 = arith.constant 0 : index
    %c0_15 = arith.constant 0 : index
    %68 = vector.load %arg3[%c2, %c0_14, %c0_15] : memref<4x4x256xf32, #tpu.memory_space<vmem>>, vector<1x4x256xf32>
    %69 = vector.shape_cast %68 : vector<1x4x256xf32> to vector<4x256xf32>
    %c2_16 = arith.constant 2 : index
    %c0_17 = arith.constant 0 : index
    %c0_18 = arith.constant 0 : index
    %70 = vector.load %arg2[%c2_16, %c0_17, %c0_18] : memref<4x4x4xf32, #tpu.memory_space<vmem>>, vector<1x4x4xf32>
    %71 = vector.shape_cast %70 : vector<1x4x4xf32> to vector<4x4xf32>
    %72 = vector.extract_strided_slice %71 {offsets = [0, 0], sizes = [4, 1], strides = [1, 1]} : vector<4x4xf32> to vector<4x1xf32>
    %73 = vector.extract_strided_slice %1 {offsets = [0, 0], sizes = [1, 256], strides = [1, 1]} : vector<4x256xf32> to vector<1x256xf32>
    %74 = vector.broadcast %72 : vector<4x1xf32> to vector<4x256xf32>
    %75 = vector.broadcast %73 : vector<1x256xf32> to vector<4x256xf32>
    %76 = arith.mulf %74, %75 : vector<4x256xf32>
    %77 = arith.addf %69, %76 : vector<4x256xf32>
    %78 = vector.extract_strided_slice %71 {offsets = [0, 1], sizes = [4, 1], strides = [1, 1]} : vector<4x4xf32> to vector<4x1xf32>
    %79 = vector.extract_strided_slice %1 {offsets = [1, 0], sizes = [1, 256], strides = [1, 1]} : vector<4x256xf32> to vector<1x256xf32>
    %80 = vector.broadcast %78 : vector<4x1xf32> to vector<4x256xf32>
    %81 = vector.broadcast %79 : vector<1x256xf32> to vector<4x256xf32>
    %82 = arith.mulf %80, %81 : vector<4x256xf32>
    %83 = arith.addf %77, %82 : vector<4x256xf32>
    %84 = vector.extract_strided_slice %71 {offsets = [0, 2], sizes = [4, 1], strides = [1, 1]} : vector<4x4xf32> to vector<4x1xf32>
    %85 = vector.extract_strided_slice %1 {offsets = [2, 0], sizes = [1, 256], strides = [1, 1]} : vector<4x256xf32> to vector<1x256xf32>
    %86 = vector.broadcast %84 : vector<4x1xf32> to vector<4x256xf32>
    %87 = vector.broadcast %85 : vector<1x256xf32> to vector<4x256xf32>
    %88 = arith.mulf %86, %87 : vector<4x256xf32>
    %89 = arith.addf %83, %88 : vector<4x256xf32>
    %90 = vector.extract_strided_slice %71 {offsets = [0, 3], sizes = [4, 1], strides = [1, 1]} : vector<4x4xf32> to vector<4x1xf32>
    %91 = vector.extract_strided_slice %1 {offsets = [3, 0], sizes = [1, 256], strides = [1, 1]} : vector<4x256xf32> to vector<1x256xf32>
    %92 = vector.broadcast %90 : vector<4x1xf32> to vector<4x256xf32>
    %93 = vector.broadcast %91 : vector<1x256xf32> to vector<4x256xf32>
    %94 = arith.mulf %92, %93 : vector<4x256xf32>
    %95 = arith.addf %89, %94 : vector<4x256xf32>
    %96 = arith.negf %95 : vector<4x256xf32>
    %97 = math.exp %96 : vector<4x256xf32>
    %cst_19 = arith.constant 1.000000e+00 : f32
    %98 = vector.broadcast %cst_19 : f32 to vector<4x256xf32>
    %99 = arith.addf %98, %97 : vector<4x256xf32>
    %100 = arith.divf %98, %99 : vector<4x256xf32>
    %c3 = arith.constant 3 : index
    %c0_20 = arith.constant 0 : index
    %c0_21 = arith.constant 0 : index
    %101 = vector.load %arg3[%c3, %c0_20, %c0_21] : memref<4x4x256xf32, #tpu.memory_space<vmem>>, vector<1x4x256xf32>
    %102 = vector.shape_cast %101 : vector<1x4x256xf32> to vector<4x256xf32>
    %c3_22 = arith.constant 3 : index
    %c0_23 = arith.constant 0 : index
    %c0_24 = arith.constant 0 : index
    %103 = vector.load %arg2[%c3_22, %c0_23, %c0_24] : memref<4x4x4xf32, #tpu.memory_space<vmem>>, vector<1x4x4xf32>
    %104 = vector.shape_cast %103 : vector<1x4x4xf32> to vector<4x4xf32>
    %105 = vector.extract_strided_slice %104 {offsets = [0, 0], sizes = [4, 1], strides = [1, 1]} : vector<4x4xf32> to vector<4x1xf32>
    %106 = vector.extract_strided_slice %1 {offsets = [0, 0], sizes = [1, 256], strides = [1, 1]} : vector<4x256xf32> to vector<1x256xf32>
    %107 = vector.broadcast %105 : vector<4x1xf32> to vector<4x256xf32>
    %108 = vector.broadcast %106 : vector<1x256xf32> to vector<4x256xf32>
    %109 = arith.mulf %107, %108 : vector<4x256xf32>
    %110 = arith.addf %102, %109 : vector<4x256xf32>
    %111 = vector.extract_strided_slice %104 {offsets = [0, 1], sizes = [4, 1], strides = [1, 1]} : vector<4x4xf32> to vector<4x1xf32>
    %112 = vector.extract_strided_slice %1 {offsets = [1, 0], sizes = [1, 256], strides = [1, 1]} : vector<4x256xf32> to vector<1x256xf32>
    %113 = vector.broadcast %111 : vector<4x1xf32> to vector<4x256xf32>
    %114 = vector.broadcast %112 : vector<1x256xf32> to vector<4x256xf32>
    %115 = arith.mulf %113, %114 : vector<4x256xf32>
    %116 = arith.addf %110, %115 : vector<4x256xf32>
    %117 = vector.extract_strided_slice %104 {offsets = [0, 2], sizes = [4, 1], strides = [1, 1]} : vector<4x4xf32> to vector<4x1xf32>
    %118 = vector.extract_strided_slice %1 {offsets = [2, 0], sizes = [1, 256], strides = [1, 1]} : vector<4x256xf32> to vector<1x256xf32>
    %119 = vector.broadcast %117 : vector<4x1xf32> to vector<4x256xf32>
    %120 = vector.broadcast %118 : vector<1x256xf32> to vector<4x256xf32>
    %121 = arith.mulf %119, %120 : vector<4x256xf32>
    %122 = arith.addf %116, %121 : vector<4x256xf32>
    %123 = vector.extract_strided_slice %104 {offsets = [0, 3], sizes = [4, 1], strides = [1, 1]} : vector<4x4xf32> to vector<4x1xf32>
    %124 = vector.extract_strided_slice %1 {offsets = [3, 0], sizes = [1, 256], strides = [1, 1]} : vector<4x256xf32> to vector<1x256xf32>
    %125 = vector.broadcast %123 : vector<4x1xf32> to vector<4x256xf32>
    %126 = vector.broadcast %124 : vector<1x256xf32> to vector<4x256xf32>
    %127 = arith.mulf %125, %126 : vector<4x256xf32>
    %128 = arith.addf %122, %127 : vector<4x256xf32>
    %129 = math.tanh %128 : vector<4x256xf32>
    %c0_25 = arith.constant 0 : index
    %c0_26 = arith.constant 0 : index
    %130 = vector.load %arg4[%c0_25, %c0_26] : memref<4x256xf32, #tpu.memory_space<vmem>>, vector<4x256xf32>
    %131 = arith.mulf %34, %130 : vector<4x256xf32>
    %132 = arith.mulf %67, %129 : vector<4x256xf32>
    %133 = arith.addf %131, %132 : vector<4x256xf32>
    %134 = math.tanh %133 : vector<4x256xf32>
    %135 = arith.mulf %100, %134 : vector<4x256xf32>
    %c0_27 = arith.constant 0 : index
    %c0_28 = arith.constant 0 : index
    %c0_29 = arith.constant 0 : index
    %136 = vector.load %arg5[%c0_27, %c0_28, %c0_29] : memref<1x4x256xf32, #tpu.memory_space<vmem>>, vector<1x4x256xf32>
    %137 = vector.shape_cast %136 : vector<1x4x256xf32> to vector<4x256xf32>
    %138 = vector.shape_cast %135 : vector<4x256xf32> to vector<1x4x256xf32>
    tpu.vector_store %arg5[%c0_27, %c0_28, %c0_29], %138 {strides = array<i32>} : memref<1x4x256xf32, #tpu.memory_space<vmem>>, vector<1x4x256xf32>,
    return
  }
  func.func @transform_0(%arg0: i32) -> (i32, i32, i32) {
    %c0_i32 = arith.constant 0 : i32
    %c0_i32_0 = arith.constant 0 : i32
    %c0_i32_1 = arith.constant 0 : i32
    return %arg0, %c0_i32, %c0_i32_0 : i32, i32, i32
  }
  func.func @transform_1(%arg0: i32) -> (i32, i32, i32) {
    %c0_i32 = arith.constant 0 : i32
    %c0_i32_0 = arith.constant 0 : i32
    %c0_i32_1 = arith.constant 0 : i32
    %c0_i32_2 = arith.constant 0 : i32
    return %c0_i32, %c0_i32_0, %c0_i32_1 : i32, i32, i32
  }
  func.func @transform_2(%arg0: i32) -> (i32, i32, i32) {
    %c0_i32 = arith.constant 0 : i32
    %c0_i32_0 = arith.constant 0 : i32
    %c0_i32_1 = arith.constant 0 : i32
    %c0_i32_2 = arith.constant 0 : i32
    return %c0_i32, %c0_i32_0, %c0_i32_1 : i32, i32, i32
  }
  func.func @transform_3(%arg0: i32) -> (i32, i32) {
    %c0_i32 = arith.constant 0 : i32
    %c0_i32_0 = arith.constant 0 : i32
    %c0_i32_1 = arith.constant 0 : i32
    return %c0_i32, %c0_i32_0 : i32, i32
  }
  func.func @transform_4(%arg0: i32) -> (i32, i32, i32) {
    %c0_i32 = arith.constant 0 : i32
    %c0_i32_0 = arith.constant 0 : i32
    %c0_i32_1 = arith.constant 0 : i32
    return %arg0, %c0_i32, %c0_i32_0 : i32, i32, i32
  }
}

</mosaic_0001>

<llo_original>
// kernel: tpu_custom_call.1
$region0: #{tpu_custom_call.1}
  #allocation0 [shape = 'u32[]', space=smem, size = 0x4, offset = 0x4, fixed_abs, tag = 'smem constant byte address 0x4 - core index']
  #allocation1 [shape = 'u32[144,128]{1,0:T(1,128)}', space=vmem, size = 0x12000, scoped, tag = 'internal scratch']
  %s0 = inlined_call_operand.hbm [shape: f32[2,4,256], index: 0, kind: input, shape index: {}]
  %s1 = inlined_call_operand.hbm [shape: f32[4,4,4], index: 1, kind: input, shape index: {}]
  %s2 = inlined_call_operand.hbm [shape: f32[4,4,256], index: 2, kind: input, shape index: {}]
  %s3 = inlined_call_operand.vmem [shape: f32[4,256], index: 3, kind: input, shape index: {}]
  %s4 = inlined_call_operand.hbm [shape: f32[2,4,256], index: 4, kind: output, shape index: {}]
  %s5 = sld [smem:[#allocation0]]
  $region61: #{tpu_custom_call.1} parent=0
    _
  %s7 = ssub.s32 1, %s5
  %s8 = scalar_select 0, %s7, %s5
  $region1: #{tpu_custom_call.1} parent=0
    #allocation2 [shape = 'u8[8192]{0}', space=vmem, size = 0x2000, scoped, tag = 'input window, operand 0']
    #allocation3 [shape = 's32[2]{0}', space=sflag, size = 0x8, scoped, tag = 'scoped memory for tpu_custom_call.1']
    #allocation4 [shape = 's32[2]{0}', space=sflag, size = 0x8, scoped, tag = 'scoped memory for tpu_custom_call.1']
    #allocation5 [shape = 'u8[8192]{0}', space=vmem, size = 0x2000, scoped, tag = 'input window, operand 1, single buffered']
    #allocation6 [shape = 's32[1]{0}', space=sflag, size = 0x4, scoped, tag = 'scoped memory for tpu_custom_call.1']
    #allocation7 [shape = 'u8[16384]{0}', space=vmem, size = 0x4000, scoped, tag = 'input window, operand 2, single buffered']
    #allocation8 [shape = 'u8[8192]{0}', space=vmem, size = 0x2000, scoped, tag = 'output window, operand 0']
    %9 = vsyncpa [#allocation3], 0
    %s10 = scalar_lea.sflag [#allocation3], 1
    %11 = vsyncpa %s10, 0
    %12 = vsyncpa [#allocation6], 0
    %13 = vsyncpa [#allocation4], 0
    %s14 = scalar_lea.sflag [#allocation4], 1
    %15 = vsyncpa %s14, 0
    loop: start=0, step=1, limit=4
    $region2: #{tpu_custom_call.1} parent=1 // loop_pre_header
      _
    $region3: #{tpu_custom_call.1} parent=1 // loop_header
      %s17 = sphi 0, %s21
      %p18 = scmp.ge.s32.totalorder %s17, 4
      %s27 = sphi 0, %s29
      %s30 = sphi 0, %s27
      %s31 = sphi 0, %s30
      %s47 = sphi 0, %s31
      %s51 = sphi 0, %s51
      %s53 = sphi 0, %s51
      %s54 = sphi 0, %s53
      %s68 = sphi 0, %s54
      %s72 = sphi 0, %s72
      %s74 = sphi 0, %s72
      %s75 = sphi 0, %s74
      %s89 = sphi 0, %s75
      %s93 = sphi 0, %s93
      %s95 = sphi 0, %s93
      %s96 = sphi 0, %s95
      %s110 = sphi 0, %s96
      %s116 = sphi 0, %s118
      %s119 = sphi 0, %s116
      %s120 = sphi 0, %s119
      %s136 = sphi 0, %s120
    $region4: #{tpu_custom_call.1} parent=1 // loop_header_branch
      %20 = sbr.rel (%p18) target = $region8
    $region5: #{tpu_custom_call.1} parent=1 // loop_body
      %s22 = ssub.s32 %s17, 1
      %s23 = ssub.s32 %s17, 2
      %s24 = sadd.s32 %s17, 1
      %s25 = ssub.s32 %s17, %s24
      %p26 = scmp.eq.s32.totalorder %s25, 0
      %s28 = sadd.s32 %s27, 1
      %s29 = scalar_select %p26, %s27, %s28
      %p32 = pneg %p26
      %p33 = scmp.eq.s32.totalorder %s17, 1
      %p34 = por %p32, %p33
      %p35 = scmp.ne.s32.totalorder %s27, %s30
      %p36 = scmp.eq.s32.totalorder %s17, 0
      %p37 = por %p35, %p36
      %p38 = scmp.ne.s32.totalorder %s27, %s30
      %p39 = scmp.eq.s32.totalorder %s22, 1
      %p40 = por %p38, %p39
      %p41 = scmp.ne.s32.totalorder %s30, %s31
      %p42 = scmp.eq.s32.totalorder %s22, 0
      %p43 = por %p41, %p42
      %p44 = scmp.ne.s32.totalorder %s30, %s31
      %p45 = scmp.eq.s32.totalorder %s23, 1
      %p46 = por %p44, %p45
      %p48 = scmp.ne.s32.totalorder %s31, %s47
      %p49 = scmp.eq.s32.totalorder %s23, 0
      %p50 = por %p48, %p49
      %s52 = sadd.s32 %s51, 1
      %p55 = scmp.eq.s32.totalorder %s17, 1
      %p56 = scmp.ne.s32.totalorder %s51, %s53
      %p57 = scmp.eq.s32.totalorder %s17, 0
      %p58 = por %p56, %p57
      %p59 = scmp.ne.s32.totalorder %s51, %s53
      %p60 = scmp.eq.s32.totalorder %s22, 1
      %p61 = por %p59, %p60
      %p62 = scmp.ne.s32.totalorder %s53, %s54
      %p63 = scmp.eq.s32.totalorder %s22, 0
      %p64 = por %p62, %p63
      %p65 = scmp.ne.s32.totalorder %s53, %s54
      %p66 = scmp.eq.s32.totalorder %s23, 1
      %p67 = por %p65, %p66
      %p69 = scmp.ne.s32.totalorder %s54, %s68
      %p70 = scmp.eq.s32.totalorder %s23, 0
      %p71 = por %p69, %p70
      %s73 = sadd.s32 %s72, 1
      %p76 = scmp.eq.s32.totalorder %s17, 1
      %p77 = scmp.ne.s32.totalorder %s72, %s74
      %p78 = scmp.eq.s32.totalorder %s17, 0
      %p79 = por %p77, %p78
      %p80 = scmp.ne.s32.totalorder %s72, %s74
      %p81 = scmp.eq.s32.totalorder %s22, 1
      %p82 = por %p80, %p81
      %p83 = scmp.ne.s32.totalorder %s74, %s75
      %p84 = scmp.eq.s32.totalorder %s22, 0
      %p85 = por %p83, %p84
      %p86 = scmp.ne.s32.totalorder %s74, %s75
      %p87 = scmp.eq.s32.totalorder %s23, 1
      %p88 = por %p86, %p87
      %p90 = scmp.ne.s32.totalorder %s75, %s89
      %p91 = scmp.eq.s32.totalorder %s23, 0
      %p92 = por %p90, %p91
      %s94 = sadd.s32 %s93, 1
      %p97 = scmp.eq.s32.totalorder %s17, 1
      %p98 = scmp.ne.s32.totalorder %s93, %s95
      %p99 = scmp.eq.s32.totalorder %s17, 0
      %p100 = por %p98, %p99
      %p101 = scmp.ne.s32.totalorder %s93, %s95
      %p102 = scmp.eq.s32.totalorder %s22, 1
      %p103 = por %p101, %p102
      %p104 = scmp.ne.s32.totalorder %s95, %s96
      %p105 = scmp.eq.s32.totalorder %s22, 0
      %p106 = por %p104, %p105
      %p107 = scmp.ne.s32.totalorder %s95, %s96
      %p108 = scmp.eq.s32.totalorder %s23, 1
      %p109 = por %p107, %p108
      %p111 = scmp.ne.s32.totalorder %s96, %s110
      %p112 = scmp.eq.s32.totalorder %s23, 0
      %p113 = por %p111, %p112
      %s114 = ssub.s32 %s17, %s24
      %p115 = scmp.eq.s32.totalorder %s114, 0
      %s117 = sadd.s32 %s116, 1
      %s118 = scalar_select %p115, %s116, %s117
      %p121 = pneg %p115
      %p122 = scmp.eq.s32.totalorder %s17, 1
      %p123 = por %p121, %p122
      %p124 = scmp.ne.s32.totalorder %s116, %s119
      %p125 = scmp.eq.s32.totalorder %s17, 0
      %p126 = por %p124, %p125
      %p127 = scmp.ne.s32.totalorder %s116, %s119
      %p128 = scmp.eq.s32.totalorder %s22, 1
      %p129 = por %p127, %p128
      %p130 = scmp.ne.s32.totalorder %s119, %s120
      %p131 = scmp.eq.s32.totalorder %s22, 0
      %p132 = por %p130, %p131
      %p133 = scmp.ne.s32.totalorder %s119, %s120
      %p134 = scmp.eq.s32.totalorder %s23, 1
      %p135 = por %p133, %p134
      %p137 = scmp.ne.s32.totalorder %s120, %s136
      %p138 = scmp.eq.s32.totalorder %s23, 0
      %p139 = por %p137, %p138
      %p140 = scmp.le.s32.totalorder 1, %s17
      %p141 = scmp.lt.s32.totalorder %s17, 3
      %p142 = pnand %p140, %p141
      %p143 = pneg %p142
      // Predicated region
      $region9: #{tpu_custom_call.1} parent=5 // pred_check
        _
      $region10: #{tpu_custom_call.1} parent=5 // pred_check_branch
        %145 = sbr.rel (%p142) target = $region12
      $region11: #{tpu_custom_call.1} parent=5 // pred_region
        %s146 = ssub.s32 %s17, 1
        // Predicated region
        $region13: #{tpu_custom_call.1} parent=11 // pred_check
          %p147 = pneg %p64
        $region14: #{tpu_custom_call.1} parent=11 // pred_check_branch
          %149 = sbr.rel (%p147) target = $region16
        $region15: #{tpu_custom_call.1} parent=11 // pred_region
          %s151 = ssub.s32 256, 256
          %152 = vsyncadd [#allocation6], %s151
          %s153 = sshll.u32 [#allocation5], 4
          %s154 = int_to_ptr.vmem [resolvable:$true] %s153
          %159 = dma.hbm_to_vmem [thread:$0]  %s1, 256, %s154, [#allocation6], 64, 64, 4
        $region16: #{tpu_custom_call.1} parent=11 // pred_fallthru
          _
        // Predicated region
        $region17: #{tpu_custom_call.1} parent=11 // pred_check
          %p160 = pneg %p85
        $region18: #{tpu_custom_call.1} parent=11 // pred_check_branch
          %162 = sbr.rel (%p160) target = $region20
        $region19: #{tpu_custom_call.1} parent=11 // pred_region
          %s164 = ssub.s32 512, 512
          %165 = vsyncadd [#allocation6], %s164
          %s166 = sshll.u32 [#allocation7], 4
          %s167 = int_to_ptr.vmem [resolvable:$true] %s166
          %172 = dma.hbm_to_vmem [thread:$0]  %s2, 512, %s167, [#allocation6], 128, 128, 8
        $region20: #{tpu_custom_call.1} parent=11 // pred_fallthru
          _
        // Predicated region
        $region21: #{tpu_custom_call.1} parent=11 // pred_check
          %p173 = pneg %p106
        $region22: #{tpu_custom_call.1} parent=11 // pred_check_branch
          %175 = sbr.rel (%p173) target = $region24
        $region23: #{tpu_custom_call.1} parent=11 // pred_region
          _
        $region24: #{tpu_custom_call.1} parent=11 // pred_fallthru
          _
      $region12: #{tpu_custom_call.1} parent=5 // pred_fallthru
        _
      %p176 = scmp.lt.s32.totalorder %s17, 2
      // Predicated region
      $region25: #{tpu_custom_call.1} parent=5 // pred_check
        %p177 = pneg %p176
      $region26: #{tpu_custom_call.1} parent=5 // pred_check_branch
        %179 = sbr.rel (%p177) target = $region28
      $region27: #{tpu_custom_call.1} parent=5 // pred_region
        // Predicated region
        $region29: #{tpu_custom_call.1} parent=27 // pred_check
          %p180 = pneg %p37
        $region30: #{tpu_custom_call.1} parent=27 // pred_check_branch
          %182 = sbr.rel (%p180) target = $region32
        $region31: #{tpu_custom_call.1} parent=27 // pred_region
          %s183 = sand.u32 %s27, 1
          %s184 = scalar_lea.sflag [#allocation3], %s183
          %s185 = sand.u32 %s27, 1
          %s186 = smul.addr %s185, 8
          %s187 = scalar_lea.vmem [#allocation2], %s186
          %s189 = ssub.s32 128, 128
          %190 = vsyncadd %s184, %s189
          %s191 = smul.addr %s17, 2
          %s192 = smul.addr %s191, 64
          %s193 = scalar_lea.hbm %s0, %s192
          %s195 = sshll.u32 %s187, 4
          %s196 = int_to_ptr.vmem [resolvable:$true] %s195
          %198 = dma.hbm_to_vmem [thread:$0]  %s193, 128, %s196, %s184
        $region32: #{tpu_custom_call.1} parent=27 // pred_fallthru
          _
      $region28: #{tpu_custom_call.1} parent=5 // pred_fallthru
        _
      %p199 = scmp.le.s32.totalorder 1, %s17
      %p200 = scmp.lt.s32.totalorder %s17, 3
      %p201 = pnand %p199, %p200
      %p202 = pneg %p201
      // Predicated region
      $region33: #{tpu_custom_call.1} parent=5 // pred_check
        _
      $region34: #{tpu_custom_call.1} parent=5 // pred_check_branch
        %204 = sbr.rel (%p201) target = $region36
      $region35: #{tpu_custom_call.1} parent=5 // pred_region
        %s205 = ssub.s32 %s17, 1
        %s206 = sand.u32 %s30, 1
        %s207 = scalar_lea.sflag [#allocation3], %s206
        %s208 = sand.u32 %s30, 1
        %s209 = smul.addr %s208, 8
        %s210 = scalar_lea.vmem [#allocation2], %s209
        // Predicated region
        $region37: #{tpu_custom_call.1} parent=35 // pred_check
          %p211 = pneg %p43
        $region38: #{tpu_custom_call.1} parent=35 // pred_check_branch
          %213 = sbr.rel (%p211) target = $region40
        $region39: #{tpu_custom_call.1} parent=35 // pred_region
          %214 = dma.done %s207, 128
        $region40: #{tpu_custom_call.1} parent=35 // pred_fallthru
          _
        // Predicated region
        $region41: #{tpu_custom_call.1} parent=35 // pred_check
          %p215 = pneg %p64
        $region42: #{tpu_custom_call.1} parent=35 // pred_check_branch
          %217 = sbr.rel (%p215) target = $region44
        $region43: #{tpu_custom_call.1} parent=35 // pred_region
          %218 = dma.done [#allocation6], 256
        $region44: #{tpu_custom_call.1} parent=35 // pred_fallthru
          _
        // Predicated region
        $region45: #{tpu_custom_call.1} parent=35 // pred_check
          %p219 = pneg %p85
        $region46: #{tpu_custom_call.1} parent=35 // pred_check_branch
          %221 = sbr.rel (%p219) target = $region48
        $region47: #{tpu_custom_call.1} parent=35 // pred_region
          %222 = dma.done [#allocation6], 512
        $region48: #{tpu_custom_call.1} parent=35 // pred_fallthru
          _
        %s223 = sand.u32 %s30, 1
        %s224 = scalar_lea.sflag [#allocation3], %s223
        %s225 = sand.u32 %s30, 1
        %s226 = smul.addr %s225, 8
        %s227 = scalar_lea.vmem [#allocation2], %s226
        %p228 = pneg %p43
        %p229 = pneg %p40
        %p230 = pneg %p64
        %p231 = pneg %p61
        %p232 = pneg %p85
        %p233 = pneg %p82
        %p234 = pneg %p106
        %p235 = pneg %p103
        %p236 = pneg %p132
        %p237 = pneg %p129
        %s238 = sand.u32 %s119, 1
        %s239 = scalar_lea.sflag [#allocation4], %s238
        %s240 = sand.u32 %s119, 1
        %s241 = smul.addr %s240, 8
        %s242 = scalar_lea.vmem [#allocation8], %s241
        %v243 = vld [vmem:[%s210] sm:$0xff]
        %v244 = vld [vmem:[#allocation7] sm:$0xff]
        %v245 = vld [vmem:[#allocation5] sm:$0xf]
        %247 = vset.pattern.permute.xlu0 0
        %248 = vperm.xlu0 %247, %v245
        %v249 = vpop.permute.xlu0 %248
        %v252 = vlaneseq
        %v253 = vshrl.u32 %v252, 7
        %v254 = vsub.s32 0, %v253
        %v255 = vrot.slane %v243, %v254
        %v256 = vlaneseq
        %v257 = vshrl.u32 %v256, 7
        %v258 = vsub.s32 4, %v257
        %v259 = vrot.slane %v243, %v258
        %v262 = vlaneseq
        %v263 = vshrl.u32 %v262, 7
        %v264 = vsub.s32 0, %v263
        %v265 = vrot.slane %v255, %v264
        %v266 = vlaneseq
        %v267 = vshrl.u32 %v266, 7
        %v268 = vsub.s32 0, %v267
        %v269 = vrot.slane %v259, %v268
        %v270 = vmul.f32 %v249, %v265
        %v271 = vmul.f32 %v249, %v269
        %v274 = vcombine.low %v270, %v271
        %v276 = vadd.f32 %v244, %v274
        %277 = vset.pattern.permute.xlu0 1
        %278 = vperm.xlu0 %277, %v245
        %v279 = vpop.permute.xlu0 %278
        %v281 = vlaneseq
        %v282 = vshrl.u32 %v281, 7
        %v283 = vsub.s32 1, %v282
        %v284 = vrot.slane %v243, %v283
        %v285 = vlaneseq
        %v286 = vshrl.u32 %v285, 7
        %v287 = vsub.s32 5, %v286
        %v288 = vrot.slane %v243, %v287
        %v291 = vlaneseq
        %v292 = vshrl.u32 %v291, 7
        %v293 = vsub.s32 1, %v292
        %v294 = vrot.slane %v284, %v293
        %v295 = vlaneseq
        %v296 = vshrl.u32 %v295, 7
        %v297 = vsub.s32 1, %v296
        %v298 = vrot.slane %v288, %v297
        %v299 = vmul.f32 %v279, %v294
        %v300 = vmul.f32 %v279, %v298
        %v303 = vcombine.low %v299, %v300
        %v305 = vadd.f32 %v276, %v303
        %306 = vset.pattern.permute.xlu0 2
        %307 = vperm.xlu0 %306, %v245
        %v308 = vpop.permute.xlu0 %307
        %v310 = vlaneseq
        %v311 = vshrl.u32 %v310, 7
        %v312 = vsub.s32 2, %v311
        %v313 = vrot.slane %v243, %v312
        %v314 = vlaneseq
        %v315 = vshrl.u32 %v314, 7
        %v316 = vsub.s32 6, %v315
        %v317 = vrot.slane %v243, %v316
        %v320 = vlaneseq
        %v321 = vshrl.u32 %v320, 7
        %v322 = vsub.s32 2, %v321
        %v323 = vrot.slane %v313, %v322
        %v324 = vlaneseq
        %v325 = vshrl.u32 %v324, 7
        %v326 = vsub.s32 2, %v325
        %v327 = vrot.slane %v317, %v326
        %v328 = vmul.f32 %v308, %v323
        %v329 = vmul.f32 %v308, %v327
        %v332 = vcombine.low %v328, %v329
        %v334 = vadd.f32 %v305, %v332
        %335 = vset.pattern.permute.xlu0 3
        %336 = vperm.xlu0 %335, %v245
        %v337 = vpop.permute.xlu0 %336
        %v339 = vlaneseq
        %v340 = vshrl.u32 %v339, 7
        %v341 = vsub.s32 3, %v340
        %v342 = vrot.slane %v243, %v341
        %v343 = vlaneseq
        %v344 = vshrl.u32 %v343, 7
        %v345 = vsub.s32 7, %v344
        %v346 = vrot.slane %v243, %v345
        %v349 = vlaneseq
        %v350 = vshrl.u32 %v349, 7
        %v351 = vsub.s32 3, %v350
        %v352 = vrot.slane %v342, %v351
        %v353 = vlaneseq
        %v354 = vshrl.u32 %v353, 7
        %v355 = vsub.s32 3, %v354
        %v356 = vrot.slane %v346, %v355
        %v357 = vmul.f32 %v337, %v352
        %v358 = vmul.f32 %v337, %v356
        %v361 = vcombine.low %v357, %v358
        %v363 = vadd.f32 %v334, %v361
        %v364 = vxor.u32 %v363, 2147483648
        %v365 = vmul.f32 %v364, 1.442695
        %v366 = vpow.pop %v365
        %v367 = vadd.f32 %v366, 1.0
        %v368 = vrcp.pop %v367
        %v369 = vmul.f32 1.0, %v368
        %s370 = scalar_lea.vmem [#allocation7], 8
        %v371 = vld [vmem:[%s370] sm:$0xff]
        %s372 = scalar_lea.vmem [#allocation5], 4
        %v373 = vld [vmem:[%s372] sm:$0xf]
        %375 = vset.pattern.permute.xlu0 0
        %376 = vperm.xlu0 %375, %v373
        %v377 = vpop.permute.xlu0 %376
        %v379 = vmul.f32 %v377, %v265
        %v380 = vmul.f32 %v377, %v269
        %v383 = vcombine.low %v379, %v380
        %v385 = vadd.f32 %v371, %v383
        %386 = vset.pattern.permute.xlu0 1
        %387 = vperm.xlu0 %386, %v373
        %v388 = vpop.permute.xlu0 %387
        %v390 = vmul.f32 %v388, %v294
        %v391 = vmul.f32 %v388, %v298
        %v394 = vcombine.low %v390, %v391
        %v396 = vadd.f32 %v385, %v394
        %397 = vset.pattern.permute.xlu0 2
        %398 = vperm.xlu0 %397, %v373
        %v399 = vpop.permute.xlu0 %398
        %v401 = vmul.f32 %v399, %v323
        %v402 = vmul.f32 %v399, %v327
        %v405 = vcombine.low %v401, %v402
        %v407 = vadd.f32 %v396, %v405
        %408 = vset.pattern.permute.xlu0 3
        %409 = vperm.xlu0 %408, %v373
        %v410 = vpop.permute.xlu0 %409
        %v412 = vmul.f32 %v410, %v352
        %v413 = vmul.f32 %v410, %v356
        %v416 = vcombine.low %v412, %v413
        %v418 = vadd.f32 %v407, %v416
        %v419 = vxor.u32 %v418, 2147483648
        %v420 = vmul.f32 %v419, 1.442695
        %v421 = vpow.pop %v420
        %v422 = vadd.f32 %v421, 1.0
        %v423 = vrcp.pop %v422
        %v424 = vmul.f32 1.0, %v423
        %s425 = scalar_lea.vmem [#allocation7], 16
        %v426 = vld [vmem:[%s425] sm:$0xff]
        %s427 = scalar_lea.vmem [#allocation5], 8
        %v428 = vld [vmem:[%s427] sm:$0xf]
        %430 = vset.pattern.permute.xlu0 0
        %431 = vperm.xlu0 %430, %v428
        %v432 = vpop.permute.xlu0 %431
        %v434 = vmul.f32 %v432, %v265
        %v435 = vmul.f32 %v432, %v269
        %v438 = vcombine.low %v434, %v435
        %v440 = vadd.f32 %v426, %v438
        %441 = vset.pattern.permute.xlu0 1
        %442 = vperm.xlu0 %441, %v428
        %v443 = vpop.permute.xlu0 %442
        %v445 = vmul.f32 %v443, %v294
        %v446 = vmul.f32 %v443, %v298
        %v449 = vcombine.low %v445, %v446
        %v451 = vadd.f32 %v440, %v449
        %452 = vset.pattern.permute.xlu0 2
        %453 = vperm.xlu0 %452, %v428
        %v454 = vpop.permute.xlu0 %453
        %v456 = vmul.f32 %v454, %v323
        %v457 = vmul.f32 %v454, %v327
        %v460 = vcombine.low %v456, %v457
        %v462 = vadd.f32 %v451, %v460
        %463 = vset.pattern.permute.xlu0 3
        %464 = vperm.xlu0 %463, %v428
        %v465 = vpop.permute.xlu0 %464
        %v467 = vmul.f32 %v465, %v352
        %v468 = vmul.f32 %v465, %v356
        %v471 = vcombine.low %v467, %v468
        %v473 = vadd.f32 %v462, %v471
        %v474 = vxor.u32 %v473, 2147483648
        %v475 = vmul.f32 %v474, 1.442695
        %v476 = vpow.pop %v475
        %v477 = vadd.f32 %v476, 1.0
        %v478 = vrcp.pop %v477
        %v479 = vmul.f32 1.0, %v478
        %s480 = scalar_lea.vmem [#allocation7], 24
        %v481 = vld [vmem:[%s480] sm:$0xff]
        %s482 = scalar_lea.vmem [#allocation5], 12
        %v483 = vld [vmem:[%s482] sm:$0xf]
        %485 = vset.pattern.permute.xlu0 0
        %486 = vperm.xlu0 %485, %v483
        %v487 = vpop.permute.xlu0 %486
        %v489 = vmul.f32 %v487, %v265
        %v490 = vmul.f32 %v487, %v269
        %v493 = vcombine.low %v489, %v490
        %v495 = vadd.f32 %v481, %v493
        %496 = vset.pattern.permute.xlu0 1
        %497 = vperm.xlu0 %496, %v483
        %v498 = vpop.permute.xlu0 %497
        %v500 = vmul.f32 %v498, %v294
        %v501 = vmul.f32 %v498, %v298
        %v504 = vcombine.low %v500, %v501
        %v506 = vadd.f32 %v495, %v504
        %507 = vset.pattern.permute.xlu0 2
        %508 = vperm.xlu0 %507, %v483
        %v509 = vpop.permute.xlu0 %508
        %v511 = vmul.f32 %v509, %v323
        %v512 = vmul.f32 %v509, %v327
        %v515 = vcombine.low %v511, %v512
        %v517 = vadd.f32 %v506, %v515
        %518 = vset.pattern.permute.xlu0 3
        %519 = vperm.xlu0 %518, %v483
        %v520 = vpop.permute.xlu0 %519
        %v522 = vmul.f32 %v520, %v352
        %v523 = vmul.f32 %v520, %v356
        %v526 = vcombine.low %v522, %v523
        %v528 = vadd.f32 %v517, %v526
        %v529 = vtanh.pop %v528
        %v530 = vld [vmem:[%s3] sm:$0xff]
        %v531 = vmul.f32 %v369, %v530
        %v532 = vmul.f32 %v424, %v529
        %v533 = vadd.f32 %v531, %v532
        %v534 = vtanh.pop %v533
        %v535 = vmul.f32 %v479, %v534
        %536 = vst [vmem:[%s242] sm:$0xff] %v535
        %s537 = sand.u32 %s119, 1
        %s538 = scalar_lea.sflag [#allocation4], %s537
        %s539 = sand.u32 %s119, 1
        %s540 = smul.addr %s539, 8
        %s541 = scalar_lea.vmem [#allocation8], %s540
        // Predicated region
        $region49: #{tpu_custom_call.1} parent=35 // pred_check
          %p542 = pneg %p129
        $region50: #{tpu_custom_call.1} parent=35 // pred_check_branch
          %544 = sbr.rel (%p542) target = $region52
        $region51: #{tpu_custom_call.1} parent=35 // pred_region
          %s546 = ssub.s32 128, 128
          %547 = vsyncadd %s538, %s546
          %s548 = smul.addr %s22, 2
          %s549 = smul.addr %s548, 64
          %s550 = scalar_lea.hbm %s4, %s549
          %s552 = sshll.u32 %s541, 4
          %s553 = int_to_ptr.vmem [resolvable:$true] %s552
          %555 = dma.vmem_to_hbm [thread:$0]  %s553, 128, %s550, %s538
        $region52: #{tpu_custom_call.1} parent=35 // pred_fallthru
          _
      $region36: #{tpu_custom_call.1} parent=5 // pred_fallthru
        _
      %p556 = scmp.le.s32.totalorder 2, %s17
      // Predicated region
      $region53: #{tpu_custom_call.1} parent=5 // pred_check
        %p557 = pneg %p556
      $region54: #{tpu_custom_call.1} parent=5 // pred_check_branch
        %559 = sbr.rel (%p557) target = $region56
      $region55: #{tpu_custom_call.1} parent=5 // pred_region
        %s560 = ssub.s32 %s17, 2
        // Predicated region
        $region57: #{tpu_custom_call.1} parent=55 // pred_check
          %p561 = pneg %p135
        $region58: #{tpu_custom_call.1} parent=55 // pred_check_branch
          %563 = sbr.rel (%p561) target = $region60
        $region59: #{tpu_custom_call.1} parent=55 // pred_region
          %s564 = sand.u32 %s120, 1
          %s565 = scalar_lea.sflag [#allocation4], %s564
          %s566 = sand.u32 %s120, 1
          %s567 = smul.addr %s566, 8
          %s568 = scalar_lea.vmem [#allocation8], %s567
          %569 = dma.done %s565, 128
        $region60: #{tpu_custom_call.1} parent=55 // pred_fallthru
          _
      $region56: #{tpu_custom_call.1} parent=5 // pred_fallthru
        _
    $region6: #{tpu_custom_call.1} parent=1 // loop_footer
      %s21 = sadd.s32 1, %s17
    $region7: #{tpu_custom_call.1} parent=1 // loop_footer_branch
      %16 = sbr.rel target = $region3
    $region8: #{tpu_custom_call.1} parent=1 // loop_exit
      _
    %570 = vsyncpa [#allocation3], 1
    %s571 = scalar_lea.sflag [#allocation3], 1
    %572 = vsyncpa %s571, 1
    %573 = vsyncpa [#allocation6], 1
    %574 = vsyncpa [#allocation4], 1
    %s575 = scalar_lea.sflag [#allocation4], 1
    %576 = vsyncpa %s575, 1

</llo_original>
